<compile_context>
chip_gen: v6e
topology: v6e:2x2x1
jax: 0.10.0
libtpu: 0.0.40
codegen_flags: <defaults>
</compile_context>

<pallas_src>
import jax
import jax.numpy as jnp
from jax.experimental import pallas as pl
from jax.experimental.pallas import tpu as pltpu


def _qlinear_kernel(params_ref, x_ref, wt_ref, b_ref, o_ref, xsum_ref):
    """One (tm, tn) output tile, accumulated over the K grid axis (axis 2).

    params_ref : SMEM f32[2]          -> [scale, zero_point]
    x_ref      : VMEM f32[tm, tk]
    wt_ref     : VMEM int8[tk, tn]    (weight pre-transposed at load time)
    b_ref      : VMEM f32[1, tn]
    o_ref      : VMEM f32[tm, tn]     (doubles as the accumulator; block
                                       index (i, j) is invariant over k)
    xsum_ref   : VMEM f32[tm, 1]      scratch (rowsum(x) for zp folding)
    """
    k = pl.program_id(2)

    @pl.when(k == 0)
    def _init():
        o_ref[...] = jnp.zeros_like(o_ref)
        xsum_ref[...] = jnp.zeros_like(xsum_ref)

    x = x_ref[...]                                   # f32
    x_bf = x.astype(jnp.bfloat16)                    # MXU LHS (bf16)
    w_bf = wt_ref[...].astype(jnp.bfloat16)          # int8 -> bf16 (exact)
    o_ref[...] += jnp.dot(x_bf, w_bf, preferred_element_type=jnp.float32)
    # rowsum in f32 (XLU work, hides under the MXU); identical across j tiles
    # but recomputing it is free filler -- see perf notes.
    xsum_ref[...] += jnp.sum(x, axis=1, keepdims=True)

    @pl.when(k == pl.num_programs(2) - 1)
    def _finalize():
        scale = params_ref[0]
        zp = params_ref[1]
        # y = scale * (x @ wq^T) - scale*zp * rowsum(x) + bias
        o_ref[...] = (scale * o_ref[...]
                      - (scale * zp) * xsum_ref[...]
                      + b_ref[...])


def prepare_quantized_weight(weight_quantized):
    """One-time (model-load) relayout: (out_f, in_f) int8 -> (in_f, out_f) int8.

    Do this ONCE and reuse the result across forward calls so the transpose
    never appears on the per-step HBM path.
    """
    return jnp.asarray(weight_quantized, jnp.int8).T


def quantized_linear(x, weight_t, bias, scale, zero_point, bits=8,
                     *, tm=None, tn=512, tk=512, vmem_limit_bytes=None):
    """Pallas TPU implementation of QuantizedLinear.forward.

    x          : (..., in_features) float32
    weight_t   : (in_features, out_features) int8 codes
                 (pre-transposed via prepare_quantized_weight)
    bias       : (out_features,) float32 or None
    scale, zero_point : python floats or JAX scalars (passed via SMEM)
    tm/tn/tk   : tile sizes; tn, tk multiples of 128 (or the full dim),
                 tm a multiple of 8 (or the full batch). Defaults are sized to
                 fit comfortably under the 16 MiB (v5e) / 32 MiB (v6e, v7x)
                 scoped VMEM defaults; pass tm explicitly for training-sized B.
    """
    del bits  # metadata only in the reference module (int8 codes assumed)

    orig_shape = x.shape
    in_f = orig_shape[-1]
    x2d = x.reshape(-1, in_f).astype(jnp.float32)
    B = x2d.shape[0]

    in_f_w, out_f = weight_t.shape
    assert in_f == in_f_w, "in_features mismatch"

    if bias is None:
        bias = jnp.zeros((out_f,), jnp.float32)

    # ---- tile selection (respect the (8,128) block constraint) ----
    tm = min(B, 256) if tm is None else tm     # never default to the full batch
    tn = min(tn, out_f)
    tk = min(tk, in_f)
    assert out_f % tn == 0 and (tn % 128 == 0 or tn == out_f), \
        "out_features tile must be a multiple of 128 (or the full dim)"
    assert in_f % tk == 0 and (tk % 128 == 0 or tk == in_f), \
        "in_features tile must be a multiple of 128 (or the full dim)"
    assert B % tm == 0 and (tm % 8 == 0 or tm == B), \
        "batch tile must be a multiple of 8 (or the full batch)"

    params = jnp.stack([jnp.asarray(scale, jnp.float32),
                        jnp.asarray(zero_point, jnp.float32)])
    bias2d = bias.reshape(1, out_f).astype(jnp.float32)

    grid = (B // tm, out_f // tn, in_f // tk)   # (M, N, K) -- reduction last

    out = pl.pallas_call(
        _qlinear_kernel,
        out_shape=jax.ShapeDtypeStruct((B, out_f), jnp.float32),
        grid_spec=pltpu.PrefetchScalarGridSpec(
            num_scalar_prefetch=0,
            grid=grid,
            in_specs=[
                # scale / zero_point in SMEM (no recompile per layer)
                pl.BlockSpec(memory_space=pltpu.MemorySpace.SMEM),
                pl.BlockSpec((tm, tk), lambda i, j, k: (i, k)),   # x tile
                pl.BlockSpec((tk, tn), lambda i, j, k: (k, j)),   # int8 weight tile
                pl.BlockSpec((1, tn), lambda i, j, k: (0, j)),    # bias tile
            ],
            out_specs=pl.BlockSpec((tm, tn), lambda i, j, k: (i, j)),
            scratch_shapes=[
                pltpu.VMEM((tm, 1), jnp.float32),    # rowsum(x) accumulator
            ],
        ),
        compiler_params=pltpu.CompilerParams(
            dimension_semantics=("parallel", "parallel", "arbitrary"),
            vmem_limit_bytes=vmem_limit_bytes,
        ),
    )(params, x2d, weight_t, bias2d)

    return out.reshape(*orig_shape[:-1], out_f)


if __name__ == "__main__":
    # Deterministic synthetic parameters (module __init__ takes them as args).
    key = jax.random.PRNGKey(0)
    k_x, k_w, k_b = jax.random.split(key, 3)

    B, in_features, out_features = 8, 256, 256
    bits = 8
    scale = 0.05
    zero_point = 3.0

    x = jax.random.normal(k_x, (B, in_features), dtype=jnp.float32)
    # Quantized weights stored as int8 codes (the module's registered buffer).
    weight_q = jax.random.randint(
        k_w, (out_features, in_features), -100, 100, dtype=jnp.int32
    ).astype(jnp.int8)
    bias = jax.random.normal(k_b, (out_features,), dtype=jnp.float32)

    # One-time weight relayout (model-load time), reused across calls.
    weight_t = prepare_quantized_weight(weight_q)

    # Small tiles here purely to exercise the (M, N, K) grid + K accumulation.
    y = quantized_linear(x, weight_t, bias, scale, zero_point, bits,
                         tn=128, tk=128)
    y = jax.block_until_ready(y)

    # Tight check against the kernel's exact math (bf16 MXU operands, f32
    # accumulate, folded zero-point) -- verifies the Pallas plumbing.
    y_matched = (scale * jnp.dot(x.astype(jnp.bfloat16),
                                 weight_t.astype(jnp.bfloat16),
                                 preferred_element_type=jnp.float32)
                 - scale * zero_point * jnp.sum(x, axis=1, keepdims=True)
                 + bias[None, :])
    assert jnp.allclose(y, y_matched, atol=1e-2, rtol=1e-3), \
        "mismatch vs matched (bf16-operand) reference"

    # Looser check against the exact PyTorch dequantize-then-matmul semantics
    # (difference is only the bf16 rounding of the activations at the MXU).
    w_fp = scale * (weight_q.astype(jnp.float32) - zero_point)
    y_ref = x @ w_fp.T + bias[None, :]
    assert jnp.allclose(y, y_ref, atol=0.5, rtol=2e-2), \
        "mismatch vs exact f32 PyTorch reference"

    print("KERNEL_OK")
</pallas_src>

<mosaic_0001>
module attributes {stable_mosaic.version = 11 : i64} {
  func.func @_qlinear_kernel(%arg0: i32, %arg1: i32, %arg2: i32, %arg3: memref<2xf32, #tpu.memory_space<smem>>, %arg4: memref<8x128xf32, #tpu.memory_space<vmem>>, %arg5: memref<128x128xi8, #tpu.memory_space<vmem>>, %arg6: memref<1x128xf32, #tpu.memory_space<vmem>>, %arg7: memref<8x128xf32, #tpu.memory_space<vmem>>, %arg8: memref<8x1xf32, #tpu.memory_space<vmem>>) attributes {dimension_semantics = [#tpu.dimension_semantics<parallel>, #tpu.dimension_semantics<parallel>, #tpu.dimension_semantics<arbitrary>], iteration_bounds = array<i64: 1, 2, 2>, scalar_prefetch = 0 : i64, scratch_operands = 1 : i64, tpu.core_type = #tpu.core_type<tc>, window_params = [{transform_indices = @transform_0, window_bounds = array<i64: 2>}, {transform_indices = @transform_1, window_bounds = array<i64: 8, 128>}, {transform_indices = @transform_2, window_bounds = array<i64: 128, 128>}, {transform_indices = @transform_3, window_bounds = array<i64: 1, 128>}, {transform_indices = @transform_4, window_bounds = array<i64: 8, 128>}]} {
    %c0_i32 = arith.constant 0 : i32
    %0 = arith.cmpi eq, %arg2, %c0_i32 : i32
    %1 = arith.extui %0 : i1 to i32
    %c0_i32_0 = arith.constant 0 : i32
    %2 = arith.cmpi ne, %1, %c0_i32_0 : i32
    scf.if %2 {
      %cst_14 = arith.constant 0.000000e+00 : f32
      %19 = vector.broadcast %cst_14 : f32 to vector<8x128xf32>
      %c0_15 = arith.constant 0 : index
      %c0_16 = arith.constant 0 : index
      %20 = vector.load %arg7[%c0_15, %c0_16] : memref<8x128xf32, #tpu.memory_space<vmem>>, vector<8x128xf32>
      tpu.vector_store %arg7[%c0_15, %c0_16], %19 {strides = array<i32>} : memref<8x128xf32, #tpu.memory_space<vmem>>, vector<8x128xf32>,
      %cst_17 = arith.constant 0.000000e+00 : f32
      %21 = vector.broadcast %cst_17 : f32 to vector<8x1xf32>
      %c0_18 = arith.constant 0 : index
      %c0_19 = arith.constant 0 : index
      %22 = vector.load %arg8[%c0_18, %c0_19] : memref<8x1xf32, #tpu.memory_space<vmem>>, vector<8x1xf32>
      tpu.vector_store %arg8[%c0_18, %c0_19], %21 {strides = array<i32>} : memref<8x1xf32, #tpu.memory_space<vmem>>, vector<8x1xf32>,
    } else {
    }
    %c0 = arith.constant 0 : index
    %c0_1 = arith.constant 0 : index
    %3 = vector.load %arg4[%c0, %c0_1] : memref<8x128xf32, #tpu.memory_space<vmem>>, vector<8x128xf32>
    %4 = arith.truncf %3 : vector<8x128xf32> to vector<8x128xbf16>
    %c0_2 = arith.constant 0 : index
    %c0_3 = arith.constant 0 : index
    %5 = vector.load %arg5[%c0_2, %c0_3] : memref<128x128xi8, #tpu.memory_space<vmem>>, vector<128x128xi8>
    %6 = arith.sitofp %5 : vector<128x128xi8> to vector<128x128xbf16>
    %c0_4 = arith.constant 0 : index
    %c0_5 = arith.constant 0 : index
    %7 = vector.load %arg7[%c0_4, %c0_5] : memref<8x128xf32, #tpu.memory_space<vmem>>, vector<8x128xf32>
    %cst = arith.constant dense<0.000000e+00> : vector<8x128xf32>
    %8 = tpu.matmul %4, %6, %cst {dimension_numbers = #tpu.dot_dimension_numbers<[1], [0], [0], [1], [0, 0, 1, 1], [], []>} : vector<8x128xbf16>, vector<128x128xbf16>, vector<8x128xf32> -> vector<8x128xf32>
    %9 = arith.addf %7, %8 : vector<8x128xf32>
    %c0_6 = arith.constant 0 : index
    %c0_7 = arith.constant 0 : index
    %10 = vector.load %arg7[%c0_6, %c0_7] : memref<8x128xf32, #tpu.memory_space<vmem>>, vector<8x128xf32>
    tpu.vector_store %arg7[%c0_6, %c0_7], %9 {strides = array<i32>} : memref<8x128xf32, #tpu.memory_space<vmem>>, vector<8x128xf32>,
    %c0_8 = arith.constant 0 : index
    %c0_9 = arith.constant 0 : index
    %11 = vector.load %arg8[%c0_8, %c0_9] : memref<8x1xf32, #tpu.memory_space<vmem>>, vector<8x1xf32>
    %cst_10 = arith.constant dense<0.000000e+00> : vector<8xf32>
    %12 = vector.multi_reduction <add>, %3, %cst_10 [1] : vector<8x128xf32> to vector<8xf32>
    %13 = vector.shape_cast %12 : vector<8xf32> to vector<8x1xf32>
    %14 = arith.addf %11, %13 : vector<8x1xf32>
    %c0_11 = arith.constant 0 : index
    %c0_12 = arith.constant 0 : index
    %15 = vector.load %arg8[%c0_11, %c0_12] : memref<8x1xf32, #tpu.memory_space<vmem>>, vector<8x1xf32>
    tpu.vector_store %arg8[%c0_11, %c0_12], %14 {strides = array<i32>} : memref<8x1xf32, #tpu.memory_space<vmem>>, vector<8x1xf32>,
    %c1_i32 = arith.constant 1 : i32
    %16 = arith.cmpi eq, %arg2, %c1_i32 : i32
    %17 = arith.extui %16 : i1 to i32
    %c0_i32_13 = arith.constant 0 : i32
    %18 = arith.cmpi ne, %17, %c0_i32_13 : i32
    scf.if %18 {
      %c0_14 = arith.constant 0 : index
      %19 = memref.load %arg3[%c0_14] : memref<2xf32, #tpu.memory_space<smem>>
      %c1 = arith.constant 1 : index
      %20 = memref.load %arg3[%c1] : memref<2xf32, #tpu.memory_space<smem>>
      %c0_15 = arith.constant 0 : index
      %c0_16 = arith.constant 0 : index
      %21 = vector.load %arg7[%c0_15, %c0_16] : memref<8x128xf32, #tpu.memory_space<vmem>>, vector<8x128xf32>
      %22 = vector.broadcast %19 : f32 to vector<8x128xf32>
      %23 = arith.mulf %22, %21 : vector<8x128xf32>
      %24 = arith.mulf %19, %20 : f32
      %c0_17 = arith.constant 0 : index
      %c0_18 = arith.constant 0 : index
      %25 = vector.load %arg8[%c0_17, %c0_18] : memref<8x1xf32, #tpu.memory_space<vmem>>, vector<8x1xf32>
      %26 = vector.broadcast %24 : f32 to vector<8x1xf32>
      %27 = arith.mulf %26, %25 : vector<8x1xf32>
      %28 = vector.broadcast %27 : vector<8x1xf32> to vector<8x128xf32>
      %29 = arith.subf %23, %28 : vector<8x128xf32>
      %c0_19 = arith.constant 0 : index
      %c0_20 = arith.constant 0 : index
      %30 = vector.load %arg6[%c0_19, %c0_20] : memref<1x128xf32, #tpu.memory_space<vmem>>, vector<1x128xf32>
      %31 = vector.broadcast %30 : vector<1x128xf32> to vector<8x128xf32>
      %32 = arith.addf %29, %31 : vector<8x128xf32>
      %c0_21 = arith.constant 0 : index
      %c0_22 = arith.constant 0 : index
      %33 = vector.load %arg7[%c0_21, %c0_22] : memref<8x128xf32, #tpu.memory_space<vmem>>, vector<8x128xf32>
      tpu.vector_store %arg7[%c0_21, %c0_22], %32 {strides = array<i32>} : memref<8x128xf32, #tpu.memory_space<vmem>>, vector<8x128xf32>,
    } else {
    }
    return
  }
  func.func @transform_0(%arg0: i32, %arg1: i32, %arg2: i32) -> i32 {
    %c0_i32 = arith.constant 0 : i32
    %c0_i32_0 = arith.constant 0 : i32
    return %c0_i32 : i32
  }
  func.func @transform_1(%arg0: i32, %arg1: i32, %arg2: i32) -> (i32, i32) {
    %c0_i32 = arith.constant 0 : i32
    return %arg0, %arg2 : i32, i32
  }
  func.func @transform_2(%arg0: i32, %arg1: i32, %arg2: i32) -> (i32, i32) {
    %c0_i32 = arith.constant 0 : i32
    return %arg2, %arg1 : i32, i32
  }
  func.func @transform_3(%arg0: i32, %arg1: i32, %arg2: i32) -> (i32, i32) {
    %c0_i32 = arith.constant 0 : i32
    %c0_i32_0 = arith.constant 0 : i32
    return %c0_i32, %arg1 : i32, i32
  }
  func.func @transform_4(%arg0: i32, %arg1: i32, %arg2: i32) -> (i32, i32) {
    %c0_i32 = arith.constant 0 : i32
    return %arg0, %arg1 : i32, i32
  }
}

</mosaic_0001>

<llo_original>
// kernel: tpu_custom_call.1
$region0: #{tpu_custom_call.1}
  #allocation0 [shape = 'u32[]', space=smem, size = 0x4, offset = 0x4, fixed_abs, tag = 'smem constant byte address 0x4 - core index']
  #allocation1 [shape = 'u32[144,128]{1,0:T(1,128)}', space=vmem, size = 0x12000, scoped, tag = 'internal scratch']
  #allocation2 [shape = 'f32[8,1]{1,0:T(8,128)}', space=vmem, size = 0x1000, scoped, tag = 'scratch operand']
  %s0 = inlined_call_operand.hbm [shape: f32[2], index: 0, kind: input, shape index: {}]
  %s1 = inlined_call_operand.hbm [shape: f32[8,256], index: 1, kind: input, shape index: {}]
  %s2 = inlined_call_operand.hbm [shape: s8[256,256], index: 2, kind: input, shape index: {}]
  %s3 = inlined_call_operand.vmem [shape: f32[1,256], index: 3, kind: input, shape index: {}]
  %s4 = inlined_call_operand.hbm [shape: f32[8,256], index: 4, kind: output, shape index: {}]
  %s5 = sld [smem:[#allocation0]]
  $region69: #{tpu_custom_call.1} parent=0
    _
  %s7 = ssub.s32 1, %s5
  %s8 = scalar_select 0, %s7, %s5
  $region1: #{tpu_custom_call.1} parent=0
    #allocation3 [shape = 'u8[512]{0}', space=smem, size = 0x200, scoped, tag = 'input window, operand 0, single buffered']
    #allocation4 [shape = 's32[2]{0}', space=sflag, size = 0x8, scoped, tag = 'scoped memory for tpu_custom_call.1']
    #allocation5 [shape = 's32[2]{0}', space=sflag, size = 0x8, scoped, tag = 'scoped memory for tpu_custom_call.1']
    #allocation6 [shape = 's32[2]{0}', space=sflag, size = 0x8, scoped, tag = 'scoped memory for tpu_custom_call.1']
    #allocation7 [shape = 'u8[8192]{0}', space=vmem, size = 0x2000, scoped, tag = 'input window, operand 1']
    #allocation8 [shape = 'u8[32768]{0}', space=vmem, size = 0x8000, scoped, tag = 'input window, operand 2']
    #allocation9 [shape = 's32[2]{0}', space=sflag, size = 0x8, scoped, tag = 'scoped memory for tpu_custom_call.1']
    #allocation10 [shape = 'u8[8192]{0}', space=vmem, size = 0x2000, scoped, tag = 'output window, operand 0']
    %9 = vsyncpa [#allocation6], 0
    %10 = vsyncpa [#allocation4], 0
    %s11 = scalar_lea.sflag [#allocation4], 1
    %12 = vsyncpa %s11, 0
    %13 = vsyncpa [#allocation9], 0
    %s14 = scalar_lea.sflag [#allocation9], 1
    %15 = vsyncpa %s14, 0
    %16 = vsyncpa [#allocation5], 0
    %s17 = scalar_lea.sflag [#allocation5], 1
    %18 = vsyncpa %s17, 0
    loop: start=0, step=1, limit=6
    $region2: #{tpu_custom_call.1} parent=1 // loop_pre_header
      _
    $region3: #{tpu_custom_call.1} parent=1 // loop_header
      %s20 = sphi 0, %s24
      %p21 = scmp.ge.s32.totalorder %s20, 6
      %s27 = sphi 0, %s46
      %s28 = sphi 0, %s42
      %s29 = sphi 0, %s38
      %s30 = sphi 0, %s27
      %s31 = sphi 0, %s28
      %s32 = sphi 0, %s29
      %s33 = sphi 0, %s30
      %s34 = sphi 0, %s31
      %s35 = sphi 0, %s32
      %s47 = sphi 0, %s47
      %s49 = sphi 0, %s47
      %s50 = sphi 0, %s49
      %s64 = sphi 0, %s50
      %s72 = sphi 0, %s74
      %s75 = sphi 0, %s72
      %s76 = sphi 0, %s75
      %s92 = sphi 0, %s76
      %s100 = sphi 0, %s102
      %s103 = sphi 0, %s100
      %s104 = sphi 0, %s103
      %s120 = sphi 0, %s104
      %s126 = sphi 0, %s128
      %s129 = sphi 0, %s126
      %s130 = sphi 0, %s129
      %s146 = sphi 0, %s130
      %s154 = sphi 0, %s156
      %s157 = sphi 0, %s154
      %s158 = sphi 0, %s157
      %s174 = sphi 0, %s158
    $region4: #{tpu_custom_call.1} parent=1 // loop_header_branch
      %23 = sbr.rel (%p21) target = $region8
    $region5: #{tpu_custom_call.1} parent=1 // loop_body
      %s25 = ssub.s32 %s20, 1
      %s26 = ssub.s32 %s20, 2
      %s36 = sadd.s32 1, %s29
      %p37 = scmp.ge.s32.totalorder %s36, 2
      %s38 = scalar_select %p37, 0, %s36
      %s39 = sadd.s32 1, %s28
      %s40 = scalar_select %p37, %s39, %s28
      %p41 = scmp.ge.s32.totalorder %s40, 2
      %s42 = scalar_select %p41, 0, %s40
      %s43 = sadd.s32 1, %s27
      %s44 = scalar_select %p41, %s43, %s27
      %p45 = scmp.ge.s32.totalorder %s44, 1
      %s46 = scalar_select %p45, 0, %s44
      %s48 = sadd.s32 %s47, 1
      %p51 = scmp.eq.s32.totalorder %s20, 3
      %p52 = scmp.ne.s32.totalorder %s47, %s49
      %p53 = scmp.eq.s32.totalorder %s20, 0
      %p54 = por %p52, %p53
      %p55 = scmp.ne.s32.totalorder %s47, %s49
      %p56 = scmp.eq.s32.totalorder %s25, 3
      %p57 = por %p55, %p56
      %p58 = scmp.ne.s32.totalorder %s49, %s50
      %p59 = scmp.eq.s32.totalorder %s25, 0
      %p60 = por %p58, %p59
      %p61 = scmp.ne.s32.totalorder %s49, %s50
      %p62 = scmp.eq.s32.totalorder %s26, 3
      %p63 = por %p61, %p62
      %p65 = scmp.ne.s32.totalorder %s50, %s64
      %p66 = scmp.eq.s32.totalorder %s26, 0
      %p67 = por %p65, %p66
      %s68 = ssub.s32 %s27, %s46
      %s69 = ssub.s32 %s29, %s38
      %s70 = sor.u32 %s68, %s69
      %p71 = scmp.eq.s32.totalorder %s70, 0
      %s73 = sadd.s32 %s72, 1
      %s74 = scalar_select %p71, %s72, %s73
      %p77 = pneg %p71
      %p78 = scmp.eq.s32.totalorder %s20, 3
      %p79 = por %p77, %p78
      %p80 = scmp.ne.s32.totalorder %s72, %s75
      %p81 = scmp.eq.s32.totalorder %s20, 0
      %p82 = por %p80, %p81
      %p83 = scmp.ne.s32.totalorder %s72, %s75
      %p84 = scmp.eq.s32.totalorder %s25, 3
      %p85 = por %p83, %p84
      %p86 = scmp.ne.s32.totalorder %s75, %s76
      %p87 = scmp.eq.s32.totalorder %s25, 0
      %p88 = por %p86, %p87
      %p89 = scmp.ne.s32.totalorder %s75, %s76
      %p90 = scmp.eq.s32.totalorder %s26, 3
      %p91 = por %p89, %p90
      %p93 = scmp.ne.s32.totalorder %s76, %s92
      %p94 = scmp.eq.s32.totalorder %s26, 0
      %p95 = por %p93, %p94
      %s96 = ssub.s32 %s29, %s38
      %s97 = ssub.s32 %s28, %s42
      %s98 = sor.u32 %s96, %s97
      %p99 = scmp.eq.s32.totalorder %s98, 0
      %s101 = sadd.s32 %s100, 1
      %s102 = scalar_select %p99, %s100, %s101
      %p105 = pneg %p99
      %p106 = scmp.eq.s32.totalorder %s20, 3
      %p107 = por %p105, %p106
      %p108 = scmp.ne.s32.totalorder %s100, %s103
      %p109 = scmp.eq.s32.totalorder %s20, 0
      %p110 = por %p108, %p109
      %p111 = scmp.ne.s32.totalorder %s100, %s103
      %p112 = scmp.eq.s32.totalorder %s25, 3
      %p113 = por %p111, %p112
      %p114 = scmp.ne.s32.totalorder %s103, %s104
      %p115 = scmp.eq.s32.totalorder %s25, 0
      %p116 = por %p114, %p115
      %p117 = scmp.ne.s32.totalorder %s103, %s104
      %p118 = scmp.eq.s32.totalorder %s26, 3
      %p119 = por %p117, %p118
      %p121 = scmp.ne.s32.totalorder %s104, %s120
      %p122 = scmp.eq.s32.totalorder %s26, 0
      %p123 = por %p121, %p122
      %s124 = ssub.s32 %s28, %s42
      %p125 = scmp.eq.s32.totalorder %s124, 0
      %s127 = sadd.s32 %s126, 1
      %s128 = scalar_select %p125, %s126, %s127
      %p131 = pneg %p125
      %p132 = scmp.eq.s32.totalorder %s20, 3
      %p133 = por %p131, %p132
      %p134 = scmp.ne.s32.totalorder %s126, %s129
      %p135 = scmp.eq.s32.totalorder %s20, 0
      %p136 = por %p134, %p135
      %p137 = scmp.ne.s32.totalorder %s126, %s129
      %p138 = scmp.eq.s32.totalorder %s25, 3
      %p139 = por %p137, %p138
      %p140 = scmp.ne.s32.totalorder %s129, %s130
      %p141 = scmp.eq.s32.totalorder %s25, 0
      %p142 = por %p140, %p141
      %p143 = scmp.ne.s32.totalorder %s129, %s130
      %p144 = scmp.eq.s32.totalorder %s26, 3
      %p145 = por %p143, %p144
      %p147 = scmp.ne.s32.totalorder %s130, %s146
      %p148 = scmp.eq.s32.totalorder %s26, 0
      %p149 = por %p147, %p148
      %s150 = ssub.s32 %s27, %s46
      %s151 = ssub.s32 %s28, %s42
      %s152 = sor.u32 %s150, %s151
      %p153 = scmp.eq.s32.totalorder %s152, 0
      %s155 = sadd.s32 %s154, 1
      %s156 = scalar_select %p153, %s154, %s155
      %p159 = pneg %p153
      %p160 = scmp.eq.s32.totalorder %s20, 3
      %p161 = por %p159, %p160
      %p162 = scmp.ne.s32.totalorder %s154, %s157
      %p163 = scmp.eq.s32.totalorder %s20, 0
      %p164 = por %p162, %p163
      %p165 = scmp.ne.s32.totalorder %s154, %s157
      %p166 = scmp.eq.s32.totalorder %s25, 3
      %p167 = por %p165, %p166
      %p168 = scmp.ne.s32.totalorder %s157, %s158
      %p169 = scmp.eq.s32.totalorder %s25, 0
      %p170 = por %p168, %p169
      %p171 = scmp.ne.s32.totalorder %s157, %s158
      %p172 = scmp.eq.s32.totalorder %s26, 3
      %p173 = por %p171, %p172
      %p175 = scmp.ne.s32.totalorder %s158, %s174
      %p176 = scmp.eq.s32.totalorder %s26, 0
      %p177 = por %p175, %p176
      %p178 = scmp.le.s32.totalorder 1, %s20
      %p179 = scmp.lt.s32.totalorder %s20, 5
      %p180 = pnand %p178, %p179
      %p181 = pneg %p180
      // Predicated region
      $region9: #{tpu_custom_call.1} parent=5 // pred_check
        _
      $region10: #{tpu_custom_call.1} parent=5 // pred_check_branch
        %183 = sbr.rel (%p180) target = $region12
      $region11: #{tpu_custom_call.1} parent=5 // pred_region
        %s184 = ssub.s32 %s20, 1
        // Predicated region
        $region13: #{tpu_custom_call.1} parent=11 // pred_check
          %p185 = pneg %p60
        $region14: #{tpu_custom_call.1} parent=11 // pred_check_branch
          %187 = sbr.rel (%p185) target = $region16
        $region15: #{tpu_custom_call.1} parent=11 // pred_region
          %s189 = ssub.s32 16, 16
          %190 = vsyncadd [#allocation6], %s189
          %193 = dma.hbm_to_smem %s0, 16, [#allocation3], [#allocation6]
        $region16: #{tpu_custom_call.1} parent=11 // pred_fallthru
          _
      $region12: #{tpu_custom_call.1} parent=5 // pred_fallthru
        _
      %p194 = scmp.lt.s32.totalorder %s20, 4
      // Predicated region
      $region17: #{tpu_custom_call.1} parent=5 // pred_check
        %p195 = pneg %p194
      $region18: #{tpu_custom_call.1} parent=5 // pred_check_branch
        %197 = sbr.rel (%p195) target = $region20
      $region19: #{tpu_custom_call.1} parent=5 // pred_region
        // Predicated region
        $region21: #{tpu_custom_call.1} parent=19 // pred_check
          %p198 = pneg %p82
        $region22: #{tpu_custom_call.1} parent=19 // pred_check_branch
          %200 = sbr.rel (%p198) target = $region24
        $region23: #{tpu_custom_call.1} parent=19 // pred_region
          %s201 = sand.u32 %s72, 1
          %s202 = scalar_lea.sflag [#allocation4], %s201
          %s203 = sand.u32 %s72, 1
          %s204 = smul.addr %s203, 8
          %s205 = scalar_lea.vmem [#allocation7], %s204
          %s207 = ssub.s32 128, 128
          %208 = vsyncadd %s202, %s207
          %s209 = smul.addr %s27, 2
          %s210 = sadd.s32 %s29, %s209
          %s211 = smul.addr %s210, 128
          %s212 = scalar_lea.hbm %s1, %s211
          %s214 = sshll.u32 %s205, 4
          %s215 = int_to_ptr.vmem [resolvable:$true] %s214
          %217 = dma.hbm_to_vmem [thread:$0]  %s212, 128, %s215, %s202
        $region24: #{tpu_custom_call.1} parent=19 // pred_fallthru
          _
        // Predicated region
        $region25: #{tpu_custom_call.1} parent=19 // pred_check
          %p218 = pneg %p110
        $region26: #{tpu_custom_call.1} parent=19 // pred_check_branch
          %220 = sbr.rel (%p218) target = $region28
        $region27: #{tpu_custom_call.1} parent=19 // pred_region
          %s221 = sand.u32 %s100, 1
          %s222 = scalar_lea.sflag [#allocation9], %s221
          %s223 = sand.u32 %s100, 1
          %s224 = smul.addr %s223, 32
          %s225 = scalar_lea.vmem [#allocation8], %s224
          %s226 = smul.u32 4, %s29
          %s228 = ssub.s32 512, 512
          %229 = vsyncadd %s222, %s228
          %s230 = smul.addr %s226, 2
          %s231 = sadd.s32 %s28, %s230
          %s232 = smul.addr %s231, 128
          %s233 = scalar_lea.hbm %s2, %s232
          %s234 = sshll.u32 %s225, 4
          %s235 = int_to_ptr.vmem [resolvable:$true] %s234
          %240 = dma.hbm_to_vmem [thread:$0]  %s233, 512, %s235, %s222, 256, 128, 8
        $region28: #{tpu_custom_call.1} parent=19 // pred_fallthru
          _
        // Predicated region
        $region29: #{tpu_custom_call.1} parent=19 // pred_check
          %p241 = pneg %p136
        $region30: #{tpu_custom_call.1} parent=19 // pred_check_branch
          %243 = sbr.rel (%p241) target = $region32
        $region31: #{tpu_custom_call.1} parent=19 // pred_region
          %p244 = scmp.lt.s32.totalorder %s28, 1
          %s245 = scalar_select %p244, %s28, 1
          %s246 = scalar_lea.vmem %s3, %s245
        $region32: #{tpu_custom_call.1} parent=19 // pred_fallthru
          _
      $region20: #{tpu_custom_call.1} parent=5 // pred_fallthru
        _
      %p247 = scmp.le.s32.totalorder 1, %s20
      %p248 = scmp.lt.s32.totalorder %s20, 5
      %p249 = pnand %p247, %p248
      %p250 = pneg %p249
      // Predicated region
      $region33: #{tpu_custom_call.1} parent=5 // pred_check
        _
      $region34: #{tpu_custom_call.1} parent=5 // pred_check_branch
        %252 = sbr.rel (%p249) target = $region36
      $region35: #{tpu_custom_call.1} parent=5 // pred_region
        %s253 = ssub.s32 %s20, 1
        // Predicated region
        $region37: #{tpu_custom_call.1} parent=35 // pred_check
          %p254 = pneg %p60
        $region38: #{tpu_custom_call.1} parent=35 // pred_check_branch
          %256 = sbr.rel (%p254) target = $region40
        $region39: #{tpu_custom_call.1} parent=35 // pred_region
          %257 = dma.done [#allocation6], 16
        $region40: #{tpu_custom_call.1} parent=35 // pred_fallthru
          _
        %s258 = sand.u32 %s75, 1
        %s259 = scalar_lea.sflag [#allocation4], %s258
        %s260 = sand.u32 %s75, 1
        %s261 = smul.addr %s260, 8
        %s262 = scalar_lea.vmem [#allocation7], %s261
        // Predicated region
        $region41: #{tpu_custom_call.1} parent=35 // pred_check
          %p263 = pneg %p88
        $region42: #{tpu_custom_call.1} parent=35 // pred_check_branch
          %265 = sbr.rel (%p263) target = $region44
        $region43: #{tpu_custom_call.1} parent=35 // pred_region
          %266 = dma.done %s259, 128
        $region44: #{tpu_custom_call.1} parent=35 // pred_fallthru
          _
        %s267 = sand.u32 %s103, 1
        %s268 = scalar_lea.sflag [#allocation9], %s267
        %s269 = sand.u32 %s103, 1
        %s270 = smul.addr %s269, 32
        %s271 = scalar_lea.vmem [#allocation8], %s270
        // Predicated region
        $region45: #{tpu_custom_call.1} parent=35 // pred_check
          %p272 = pneg %p116
        $region46: #{tpu_custom_call.1} parent=35 // pred_check_branch
          %274 = sbr.rel (%p272) target = $region48
        $region47: #{tpu_custom_call.1} parent=35 // pred_region
          %275 = dma.done %s268, 512
        $region48: #{tpu_custom_call.1} parent=35 // pred_fallthru
          _
        %276 = sfence
        %p277 = pneg %p60
        %p278 = pneg %p57
        %s279 = sand.u32 %s75, 1
        %s280 = scalar_lea.sflag [#allocation4], %s279
        %s281 = sand.u32 %s75, 1
        %s282 = smul.addr %s281, 8
        %s283 = scalar_lea.vmem [#allocation7], %s282
        %p284 = pneg %p88
        %p285 = pneg %p85
        %s286 = sand.u32 %s103, 1
        %s287 = scalar_lea.sflag [#allocation9], %s286
        %s288 = sand.u32 %s103, 1
        %s289 = smul.addr %s288, 32
        %s290 = scalar_lea.vmem [#allocation8], %s289
        %p291 = pneg %p116
        %p292 = pneg %p113
        %p293 = scmp.lt.s32.totalorder %s31, 1
        %s294 = scalar_select %p293, %s31, 1
        %s295 = scalar_lea.vmem %s3, %s294
        %p296 = pneg %p142
        %p297 = pneg %p139
        %p298 = pneg %p170
        %p299 = pneg %p167
        %s300 = sand.u32 %s157, 1
        %s301 = scalar_lea.sflag [#allocation5], %s300
        %s302 = sand.u32 %s157, 1
        %s303 = smul.addr %s302, 8
        %s304 = scalar_lea.vmem [#allocation10], %s303
        %s305 = smul.u32 4, %s32
        %p306 = scmp.lt.s32.totalorder %s31, 1
        %s307 = scalar_select %p306, %s31, 1
        %s308 = scalar_lea.vmem %s3, %s307
        %p310 = scmp.eq.s32.totalorder %s32, 0
        // Predicated region
        $region49: #{tpu_custom_call.1} parent=35 // pred_check
          %p311 = pneg %p310
        $region50: #{tpu_custom_call.1} parent=35 // pred_check_branch
          %313 = sbr.rel (%p311) target = $region52
        $region51: #{tpu_custom_call.1} parent=35 // pred_region
          %314 = vst [vmem:[%s304] sm:$0xff] 0.0
          %vm315 = vcmask 7168
          %316 = vst.msk [vmem:[#allocation2] sm:$0xff] %vm315, 0.0
        $region52: #{tpu_custom_call.1} parent=35 // pred_fallthru
          _
        %v317 = vld [vmem:[%s262] sm:$0xff]
        %v318 = vpack.c.bf16 %v317, %v317
        %v319 = vld [vmem:[%s271] sm:$0xff]
        %v320 = vld [vmem:[%s271 + $0x8] sm:$0xff]
        %v321 = vld [vmem:[%s271 + $0x10] sm:$0xff]
        %v322 = vld [vmem:[%s271 + $0x18] sm:$0xff]
        %v323 = vunpack.c.l.s8.bf16 %v319
        %v324 = vunpack.c.h.s8.bf16 %v319
        %v325 = vunpack.c.l.s8.bf16 %v320
        %v326 = vunpack.c.h.s8.bf16 %v320
        %v327 = vunpack.c.l.s8.bf16 %v321
        %v328 = vunpack.c.h.s8.bf16 %v321
        %v329 = vunpack.c.l.s8.bf16 %v322
        %v330 = vunpack.c.h.s8.bf16 %v322
        %v331 = vld [vmem:[%s304] sm:$0xff]
        %332 = vmatprep.subr.bf16.mxu0 0
        %333 = vmatpush1.bf16.msra.mxu0 %v330
        %334 = vmatprep.subr.bf16.mxu0 0
        %335 = vmatpush1.bf16.msra.mxu0 %v329
        %336 = vmatprep.subr.bf16.mxu0 0
        %337 = vmatpush1.bf16.msra.mxu0 %v328
        %338 = vmatprep.subr.bf16.mxu0 0
        %339 = vmatpush1.bf16.msra.mxu0 %v327
        %340 = vmatprep.subr.bf16.mxu0 0
        %341 = vmatpush1.bf16.msra.mxu0 %v326
        %342 = vmatprep.subr.bf16.mxu0 0
        %343 = vmatpush1.bf16.msra.mxu0 %v325
        %344 = vmatprep.subr.bf16.mxu0 0
        %345 = vmatpush1.bf16.msra.mxu0 %v324
        %346 = vmatprep.subr.bf16.mxu0 0
        %347 = vmatpush1.bf16.msra.mxu0 %v323
        %348 = vmatprep.subr.bf16.mxu0 0
        %349 = vmatpush2.bf16.msra.mxu0 0
        %350 = vmatprep.subr.bf16.mxu0 0
        %351 = vmatpush2.bf16.msra.mxu0 0
        %352 = vmatprep.subr.bf16.mxu0 0
        %353 = vmatpush2.bf16.msra.mxu0 0
        %354 = vmatprep.subr.bf16.mxu0 0
        %355 = vmatpush2.bf16.msra.mxu0 0
        %356 = vmatprep.subr.bf16.mxu0 0
        %357 = vmatpush2.bf16.msra.mxu0 0
        %358 = vmatprep.subr.bf16.mxu0 0
        %359 = vmatpush2.bf16.msra.mxu0 0
        %360 = vmatprep.subr.bf16.mxu0 0
        %361 = vmatpush2.bf16.msra.mxu0 0
        %362 = vmatprep.subr.bf16.mxu0 0
        %363 = vmatpush2.bf16.msra.mxu0 0
        %364 = vmatprep.mubr.bf16.mxu0 0
        %365 = vmatmul.mubr.bf16.gmra.mxu0 %v318
        %v366 = vpop.f32.mrf.mxu0
        %v367 = vadd.f32 0.0, %v366
        %v368 = vpop.f32.mrf.mxu0
        %v369 = vpop.f32.mrf.mxu0
        %v370 = vpop.f32.mrf.mxu0
        %371 = vdwg.mxu0
        %v372 = vadd.f32 %v331, %v367
        %373 = vst [vmem:[%s304] sm:$0xff] %v372
        %v374 = vld [vmem:[#allocation2] sm:$0xff]
        %375 = vadd.xlane.f32.xlu0 %v317
        %v376 = vpop.xlane.xlu0 %375
        %v377 = vadd.f32 %v374, %v376
        %vm378 = vcmask 7168
        %379 = vst.msk [vmem:[#allocation2] sm:$0xff] %vm378, %v377
        %p380 = scmp.eq.s32.totalorder %s32, 1
        // Predicated region
        $region53: #{tpu_custom_call.1} parent=35 // pred_check
          %p381 = pneg %p380
        $region54: #{tpu_custom_call.1} parent=35 // pred_check_branch
          %383 = sbr.rel (%p381) target = $region56
        $region55: #{tpu_custom_call.1} parent=35 // pred_region
          %s384 = sld [smem:[#allocation3]]
          %s385 = sld [smem:[#allocation3 + $0x1]]
          %v386 = vld [vmem:[%s304] sm:$0xff]
          %v387 = vstv %s384
          %v388 = vmul.f32 %v387, %v386
          %s389 = smul.f32 %s384, %s385
          %v390 = vld [vmem:[#allocation2] sm:$0xff]
          %v391 = vstv %s389
          %v392 = vmul.f32 %v391, %v390
          %394 = vset.pattern.permute.xlu0 0
          %395 = vperm.xlu0 %394, %v392
          %v396 = vpop.permute.xlu0 %395
          %v398 = vsub.f32 %v388, %v396
          %v399 = vld [vmem:[%s308] sm:$0x1]
          %v401 = vlaneseq
          %v402 = vshrl.u32 %v401, 7
          %v403 = vsub.s32 0, %v402
          %v404 = vrot.slane %v399, %v403
          %v406 = vadd.f32 %v398, %v404
          %407 = vst [vmem:[%s304] sm:$0xff] %v406
        $region56: #{tpu_custom_call.1} parent=35 // pred_fallthru
          _
        %s408 = sand.u32 %s157, 1
        %s409 = scalar_lea.sflag [#allocation5], %s408
        %s410 = sand.u32 %s157, 1
        %s411 = smul.addr %s410, 8
        %s412 = scalar_lea.vmem [#allocation10], %s411
        // Predicated region
        $region57: #{tpu_custom_call.1} parent=35 // pred_check
          %p413 = pneg %p167
        $region58: #{tpu_custom_call.1} parent=35 // pred_check_branch
          %415 = sbr.rel (%p413) target = $region60
        $region59: #{tpu_custom_call.1} parent=35 // pred_region
          %s417 = ssub.s32 128, 128
          %418 = vsyncadd %s409, %s417
          %s419 = smul.addr %s30, 2
          %s420 = sadd.s32 %s31, %s419
          %s421 = smul.addr %s420, 128
          %s422 = scalar_lea.hbm %s4, %s421
          %s424 = sshll.u32 %s412, 4
          %s425 = int_to_ptr.vmem [resolvable:$true] %s424
          %427 = dma.vmem_to_hbm [thread:$0]  %s425, 128, %s422, %s409
        $region60: #{tpu_custom_call.1} parent=35 // pred_fallthru
          _
      $region36: #{tpu_custom_call.1} parent=5 // pred_fallthru
        _
      %p428 = scmp.le.s32.totalorder 2, %s20
      // Predicated region
      $region61: #{tpu_custom_call.1} parent=5 // pred_check
        %p429 = pneg %p428
      $region62: #{tpu_custom_call.1} parent=5 // pred_check_branch
        %431 = sbr.rel (%p429) target = $region64
      $region63: #{tpu_custom_call.1} parent=5 // pred_region
        %s432 = ssub.s32 %s20, 2
        // Predicated region
        $region65: #{tpu_custom_call.1} parent=63 // pred_check
          %p433 = pneg %p173
        $region66: #{tpu_custom_call.1} parent=63 // pred_check_branch
          %435 = sbr.rel (%p433) target = $region68
        $region67: #{tpu_custom_call.1} parent=63 // pred_region
          %s436 = sand.u32 %s158, 1
          %s437 = scalar_lea.sflag [#allocation5], %s436
          %s438 = sand.u32 %s158, 1
          %s439 = smul.addr %s438, 8
          %s440 = scalar_lea.vmem [#allocation10], %s439
          %441 = dma.done %s437, 128
        $region68: #{tpu_custom_call.1} parent=63 // pred_fallthru
          _
      $region64: #{tpu_custom_call.1} parent=5 // pred_fallthru
        _
    $region6: #{tpu_custom_call.1} parent=1 // loop_footer
      %s24 = sadd.s32 1, %s20
    $region7: #{tpu_custom_call.1} parent=1 // loop_footer_branch
      %19 = sbr.rel target = $region3
    $region8: #{tpu_custom_call.1} parent=1 // loop_exit
      _
    %442 = vsyncpa [#allocation4], 1
    %s443 = scalar_lea.sflag [#allocation4], 1
    %444 = vsyncpa %s443, 1
    %445 = vsyncpa [#allocation9], 1
    %s446 = scalar_lea.sflag [#allocation9], 1
    %447 = vsyncpa %s446, 1
    %448 = vsyncpa [#allocation5], 1
    %s449 = scalar_lea.sflag [#allocation5], 1
    %450 = vsyncpa %s449, 1
    %451 = vsyncpa [#allocation6], 1
    %s452 = scalar_lea.sflag [#allocation6], 1
    %453 = vsyncpa %s452, 1

</llo_original>
